<compile_context>
chip_gen: v7x
topology: tpu7x:2x2x1
jax: 0.10.0
libtpu: 0.0.40
codegen_flags: <defaults>
</compile_context>

<pallas_src>
import jax
import jax.numpy as jnp
from jax.experimental import pallas as pl
from jax.experimental.pallas import tpu as pltpu


def _round_up(x, m):
    return ((x + m - 1) // m) * m


def _mish(x):
    # Mish(x) = x * tanh(softplus(x)).
    # With t = exp(x): tanh(log(1 + t)) = 1 - 2 / ((1 + t)^2 + 1), so
    #   mish(x) = x * (1 - 2 * reciprocal((1 + t)^2 + 1))
    # One EUP exp + one exact reciprocal; overflow-safe (t -> inf => mish -> x).
    t = jnp.exp(x)
    u = 1.0 + t
    return x * (1.0 - 2.0 * pl.reciprocal(u * u + 1.0, approx=False))


def _critic_kernel(s_ref, a_ref, w_ref, b_ref, out_ref):
    # All geometry is static (derived from ref shapes at trace time).
    sp = s_ref.shape[1]            # padded state_dim  (multiple of 8)
    ap = a_ref.shape[1]            # padded action_dim (multiple of 8)
    h2 = b_ref.shape[1]            # 2 * hidden_dim (both towers side by side)
    H = h2 // 2
    r1 = sp + ap                   # rows used by the fused layer-1 weight
    # Fused (block-diagonal) layout has 2*2H rows for layers 2-3, the split
    # (two H-wide chains) layout has 2*H rows.
    fused = (w_ref.shape[0] - r1) == 3 * h2
    cdt = w_ref.dtype              # compute dtype for the dots (f32 or bf16)
    f32 = jnp.float32

    s = s_ref[...].astype(cdt)
    a = a_ref[...].astype(cdt)

    # Layer 1: concat([state, action]) folded into a row-split fused weight
    # (cols 0..H-1 = tower 1, cols H..2H-1 = tower 2).  Padded input columns
    # hit zero weight rows, so they contribute nothing.
    z1 = (jnp.dot(s, w_ref[0:sp, :], preferred_element_type=f32)
          + jnp.dot(a, w_ref[sp:r1, :], preferred_element_type=f32)
          + b_ref[0:1, :])
    h = _mish(z1)

    if fused:
        # Block-diagonal (2H, 2H) layers: one dot keeps both towers independent.
        rB = r1 + h2
        rD = rB + h2
        h = _mish(jnp.dot(h.astype(cdt), w_ref[r1:rB, :],
                          preferred_element_type=f32) + b_ref[1:2, :])
        h = _mish(jnp.dot(h.astype(cdt), w_ref[rB:rD, :],
                          preferred_element_type=f32) + b_ref[2:3, :])
        rH = rD
        # Head: (2H, 2H) block with only the first 2 columns nonzero; slice the
        # columns to <=128 so no extra MXU passes are spent on zeros.
        if h2 <= 128:
            q = (jnp.dot(h.astype(cdt), w_ref[rH:rH + h2, :],
                         preferred_element_type=f32) + b_ref[3:4, :])
        else:
            q = (jnp.dot(h.astype(cdt), w_ref[rH:rH + h2, :128],
                         preferred_element_type=f32) + b_ref[3:4, :128])
    else:
        # Split mode (2H > 128): two independent H x H dot chains, no zeros on
        # the MXU.  Cleanest when H is a multiple of 128 (lane-aligned slices).
        rB = r1 + H
        rD = rB + H
        h1 = _mish(jnp.dot(h[:, :H].astype(cdt), w_ref[r1:rB, :H],
                           preferred_element_type=f32) + b_ref[1:2, :H])
        g2 = _mish(jnp.dot(h[:, H:].astype(cdt), w_ref[r1:rB, H:],
                           preferred_element_type=f32) + b_ref[1:2, H:])
        h1 = _mish(jnp.dot(h1.astype(cdt), w_ref[rB:rD, :H],
                           preferred_element_type=f32) + b_ref[2:3, :H])
        g2 = _mish(jnp.dot(g2.astype(cdt), w_ref[rB:rD, H:],
                           preferred_element_type=f32) + b_ref[2:3, H:])
        rH = rD
        nc = h2 if h2 <= 128 else 128
        q = (jnp.dot(h1.astype(cdt), w_ref[rH:rH + H, :nc],
                     preferred_element_type=f32)
             + jnp.dot(g2.astype(cdt), w_ref[rH + H:rH + h2, :nc],
                       preferred_element_type=f32)
             + b_ref[3:4, :nc])

    if out_ref.shape[1] == 1:
        # q_min mode: min(q1, q2) computed in-kernel.
        out_ref[...] = jnp.minimum(q[:, 0:1], q[:, 1:2]).astype(out_ref.dtype)
    else:
        out_ref[...] = q[:, 0:2].astype(out_ref.dtype)


def pack_critic_params(params, state_dim, action_dim, hidden_dim, *,
                       fuse_towers=None, weights_dtype=jnp.float32):
    """Fuse the twin towers' params (host-side, once) into two buffers:
       w_packed: (sp + ap + {6H | 4H}, 2H)   [fused | split layout]
       b_packed: (4, 2H) float32
    Row layout: [W1_state(pad) | W1_action(pad) | W2 | W3 | W4_head(pad)].
    """
    (w1a, b1a, w2a, b2a, w3a, b3a, w4a, b4a) = params[0]
    (w1b, b1b, w2b, b2b, w3b, b3b, w4b, b4b) = params[1]
    H = hidden_dim
    H2 = 2 * H
    assert H % 8 == 0, "hidden_dim must be a multiple of 8 (sublane alignment)"
    if fuse_towers is None:
        # Block-diag fusion is only free while both towers fit one MXU pass
        # (128 wide on v5e; conservative gate for every generation).
        fuse_towers = (H2 <= 128)

    sp = _round_up(state_dim, 8)
    ap = _round_up(action_dim, 8)
    f32 = jnp.float32

    # Layer 1: towers side-by-side on columns; rows split into padded state /
    # action groups so the wrapper never materializes concat([state, action]).
    w1 = jnp.concatenate([w1a, w1b], axis=1).astype(f32)        # (sd+ad, 2H)
    w1_s = jnp.zeros((sp, H2), f32).at[:state_dim, :].set(w1[:state_dim])
    w1_a = jnp.zeros((ap, H2), f32).at[:action_dim, :].set(w1[state_dim:])

    z = jnp.zeros((H, H), f32)
    if fuse_towers:
        w2 = jnp.block([[w2a, z], [z, w2b]])                    # (2H, 2H)
        w3 = jnp.block([[w3a, z], [z, w3b]])
    else:
        w2 = jnp.concatenate([w2a, w2b], axis=1)                 # (H, 2H)
        w3 = jnp.concatenate([w3a, w3b], axis=1)

    w4 = jnp.zeros((H2, H2), f32)                                # cols >= 2 zero
    w4 = w4.at[:H, 0:1].set(w4a).at[H:, 1:2].set(w4b)

    w_packed = jnp.concatenate([w1_s, w1_a, w2, w3, w4],
                               axis=0).astype(weights_dtype)

    b1 = jnp.concatenate([b1a, b1b], axis=1)
    b2 = jnp.concatenate([b2a, b2b], axis=1)
    b3 = jnp.concatenate([b3a, b3b], axis=1)
    b4 = jnp.zeros((1, H2), f32).at[0, 0].set(b4a[0, 0]).at[0, 1].set(b4b[0, 0])
    b_packed = jnp.concatenate([b1, b2, b3, b4], axis=0).astype(f32)

    return dict(w=w_packed, b=b_packed, state_dim=state_dim,
                action_dim=action_dim, sp=sp, ap=ap, hidden_dim=H,
                fused=fuse_towers)


def _critic_call(state, action, packed, *, row_tile=512, emit_min=False):
    w, b = packed["w"], packed["b"]
    sd, ad = packed["state_dim"], packed["action_dim"]
    sp, ap = packed["sp"], packed["ap"]
    B = state.shape[0]
    state = state.astype(jnp.float32)
    action = action.astype(jnp.float32)

    # Pad feature columns to the sublane-aligned widths (no-op when aligned).
    if sp != sd:
        state = jnp.pad(state, ((0, 0), (0, sp - sd)))
    if ap != ad:
        action = jnp.pad(action, ((0, 0), (0, ap - ad)))

    # Row tile: multiple of 8, <= row_tile; batch zero-padded to a multiple.
    tb = min(int(row_tile), max(B, 8))
    tb = -(-tb // 8) * 8
    bp = -(-B // tb) * tb
    if bp != B:
        state = jnp.pad(state, ((0, bp - B), (0, 0)))
        action = jnp.pad(action, ((0, bp - B), (0, 0)))

    nout = 1 if emit_min else 2
    out = pl.pallas_call(
        _critic_kernel,
        out_shape=jax.ShapeDtypeStruct((bp, nout), jnp.float32),
        grid=(bp // tb,),
        in_specs=[
            pl.BlockSpec((tb, sp), lambda i: (i, 0)),
            pl.BlockSpec((tb, ap), lambda i: (i, 0)),
            pl.BlockSpec(w.shape, lambda i: (0, 0)),   # weights VMEM-resident
            pl.BlockSpec(b.shape, lambda i: (0, 0)),   # biases  VMEM-resident
        ],
        out_specs=pl.BlockSpec((tb, nout), lambda i: (i, 0)),
        compiler_params=pltpu.CompilerParams(
            dimension_semantics=("parallel",)),
    )(state, action, w, b)
    if bp != B:
        out = out[:B]
    return out


def critic_forward(state, action, packed, *, row_tile=512):
    """Returns (q1, q2), each (B, 1) - same semantics as Critic.forward."""
    out = _critic_call(state, action, packed, row_tile=row_tile, emit_min=False)
    return out[:, 0:1], out[:, 1:2]


def critic_q1(state, action, packed, *, row_tile=512):
    # TODO(synk): a dedicated single-tower kernel would halve the MXU work here.
    return critic_forward(state, action, packed, row_tile=row_tile)[0]


def critic_q_min(state, action, packed, *, row_tile=512):
    """min(q1, q2), computed in-kernel (single (B, 1) output)."""
    return _critic_call(state, action, packed, row_tile=row_tile, emit_min=True)


# ----------------------------------------------------------------------------
# Parameter init (PyTorch nn.Linear default) + pure-JAX reference
# ----------------------------------------------------------------------------
def init_linear(key, fan_in, fan_out):
    kw, kb = jax.random.split(key)
    bound = 1.0 / jnp.sqrt(fan_in)
    w = jax.random.uniform(kw, (fan_in, fan_out), jnp.float32, -bound, bound)
    b = jax.random.uniform(kb, (1, fan_out), jnp.float32, -bound, bound)
    return w, b


def init_critic_params(key, state_dim, action_dim, hidden_dim):
    in_dim = state_dim + action_dim
    dims = [(in_dim, hidden_dim), (hidden_dim, hidden_dim),
            (hidden_dim, hidden_dim), (hidden_dim, 1)]

    def make_mlp(k):
        keys = jax.random.split(k, len(dims))
        p = []
        for kk, (fi, fo) in zip(keys, dims):
            w, b = init_linear(kk, fi, fo)
            p += [w, b]
        return tuple(p)

    k1, k2 = jax.random.split(key)
    return make_mlp(k1), make_mlp(k2)


def critic_forward_ref(state, action, params):
    x = jnp.concatenate([state, action], axis=-1)
    hp = jax.lax.Precision.HIGHEST

    def mish(v):
        return v * jnp.tanh(jax.nn.softplus(v))

    def mlp(p):
        w1, b1, w2, b2, w3, b3, w4, b4 = p
        h = mish(jnp.dot(x, w1, precision=hp) + b1)
        h = mish(jnp.dot(h, w2, precision=hp) + b2)
        h = mish(jnp.dot(h, w3, precision=hp) + b3)
        return jnp.dot(h, w4, precision=hp) + b4

    return mlp(params[0]), mlp(params[1])


if __name__ == "__main__":
    key = jax.random.PRNGKey(0)
    k_params, k_state, k_action = jax.random.split(key, 3)

    # --- small shapes: fused block-diagonal path, single-tile grid -----------
    batch, state_dim, action_dim, hidden_dim = 8, 24, 8, 32
    params = init_critic_params(k_params, state_dim, action_dim, hidden_dim)
    packed = pack_critic_params(params, state_dim, action_dim, hidden_dim)
    assert packed["fused"]

    state = jax.random.normal(k_state, (batch, state_dim), jnp.float32)
    action = jax.random.normal(k_action, (batch, action_dim), jnp.float32)

    q1, q2 = critic_forward(state, action, packed)
    jax.block_until_ready((q1, q2))
    q1_ref, q2_ref = critic_forward_ref(state, action, params)
    assert q1.shape == (batch, 1) and q2.shape == (batch, 1)
    assert jnp.allclose(q1, q1_ref, atol=5e-3, rtol=5e-3)
    assert jnp.allclose(q2, q2_ref, atol=5e-3, rtol=5e-3)

    qmin = critic_q_min(state, action, packed)
    assert qmin.shape == (batch, 1)
    assert jnp.allclose(qmin, jnp.minimum(q1_ref, q2_ref), atol=5e-3, rtol=5e-3)

    # --- multi-tile batch grid: ragged batch padded to the row tile ---------
    kb1, kb2 = jax.random.split(jax.random.PRNGKey(1))
    big_b = 300
    state_b = jax.random.normal(kb1, (big_b, state_dim), jnp.float32)
    action_b = jax.random.normal(kb2, (big_b, action_dim), jnp.float32)
    q1b, q2b = critic_forward(state_b, action_b, packed, row_tile=128)  # grid=(3,)
    q1b_ref, q2b_ref = critic_forward_ref(state_b, action_b, params)
    assert q1b.shape == (big_b, 1)
    assert jnp.allclose(q1b, q1b_ref, atol=5e-3, rtol=5e-3)
    assert jnp.allclose(q2b, q2b_ref, atol=5e-3, rtol=5e-3)

    # --- non-fused path (2H > 128 MXU gate): two H-wide dot chains -----------
    hidden_big = 128
    params_big = init_critic_params(jax.random.PRNGKey(2), state_dim,
                                    action_dim, hidden_big)
    packed_big = pack_critic_params(params_big, state_dim, action_dim,
                                    hidden_big)
    assert not packed_big["fused"]
    sb = jax.random.normal(jax.random.PRNGKey(3), (64, state_dim), jnp.float32)
    ab = jax.random.normal(jax.random.PRNGKey(4), (64, action_dim), jnp.float32)
    q1s, q2s = critic_forward(sb, ab, packed_big)
    jax.block_until_ready((q1s, q2s))
    q1s_ref, q2s_ref = critic_forward_ref(sb, ab, params_big)
    assert jnp.allclose(q1s, q1s_ref, atol=5e-3, rtol=5e-3)
    assert jnp.allclose(q2s, q2s_ref, atol=5e-3, rtol=5e-3)

    print("KERNEL_OK")
</pallas_src>

<mosaic_0001>
module attributes {stable_mosaic.version = 11 : i64} {
  func.func @_critic_kernel(%arg0: i32, %arg1: memref<8x24xf32, #tpu.memory_space<vmem>>, %arg2: memref<8x8xf32, #tpu.memory_space<vmem>>, %arg3: memref<224x64xf32, #tpu.memory_space<vmem>>, %arg4: memref<4x64xf32, #tpu.memory_space<vmem>>, %arg5: memref<8x2xf32, #tpu.memory_space<vmem>>) attributes {dimension_semantics = [#tpu.dimension_semantics<parallel>], iteration_bounds = array<i64: 1>, scalar_prefetch = 0 : i64, scratch_operands = 0 : i64, tpu.core_type = #tpu.core_type<tc>, window_params = [{transform_indices = @transform_0, window_bounds = array<i64: 8, 24>}, {transform_indices = @transform_1, window_bounds = array<i64: 8, 8>}, {pipeline_mode = #tpu.pipeline_mode<synchronous>, transform_indices = @transform_2, window_bounds = array<i64: 224, 64>}, {pipeline_mode = #tpu.pipeline_mode<synchronous>, transform_indices = @transform_3, window_bounds = array<i64: 4, 64>}, {transform_indices = @transform_4, window_bounds = array<i64: 8, 2>}]} {
    %c0 = arith.constant 0 : index
    %c0_0 = arith.constant 0 : index
    %0 = vector.load %arg1[%c0, %c0_0] : memref<8x24xf32, #tpu.memory_space<vmem>>, vector<8x24xf32>
    %c0_1 = arith.constant 0 : index
    %c0_2 = arith.constant 0 : index
    %1 = vector.load %arg2[%c0_1, %c0_2] : memref<8x8xf32, #tpu.memory_space<vmem>>, vector<8x8xf32>
    %c0_3 = arith.constant 0 : index
    %c0_4 = arith.constant 0 : index
    %2 = vector.load %arg3[%c0_3, %c0_4] : memref<224x64xf32, #tpu.memory_space<vmem>>, vector<24x64xf32>
    %cst = arith.constant dense<0.000000e+00> : vector<8x64xf32>
    %3 = tpu.matmul %0, %2, %cst {dimension_numbers = #tpu.dot_dimension_numbers<[1], [0], [0], [1], [0, 0, 1, 1], [], []>} : vector<8x24xf32>, vector<24x64xf32>, vector<8x64xf32> -> vector<8x64xf32>
    %c24 = arith.constant 24 : index
    %c0_5 = arith.constant 0 : index
    %4 = vector.load %arg3[%c24, %c0_5] : memref<224x64xf32, #tpu.memory_space<vmem>>, vector<8x64xf32>
    %cst_6 = arith.constant dense<0.000000e+00> : vector<8x64xf32>
    %5 = tpu.matmul %1, %4, %cst_6 {dimension_numbers = #tpu.dot_dimension_numbers<[1], [0], [0], [1], [0, 0, 1, 1], [], []>} : vector<8x8xf32>, vector<8x64xf32>, vector<8x64xf32> -> vector<8x64xf32>
    %6 = arith.addf %3, %5 : vector<8x64xf32>
    %c0_7 = arith.constant 0 : index
    %c0_8 = arith.constant 0 : index
    %7 = vector.load %arg4[%c0_7, %c0_8] : memref<4x64xf32, #tpu.memory_space<vmem>>, vector<1x64xf32>
    %8 = vector.broadcast %7 : vector<1x64xf32> to vector<8x64xf32>
    %9 = arith.addf %6, %8 : vector<8x64xf32>
    %10 = math.exp %9 : vector<8x64xf32>
    %cst_9 = arith.constant 1.000000e+00 : f32
    %11 = vector.broadcast %cst_9 : f32 to vector<8x64xf32>
    %12 = arith.addf %11, %10 : vector<8x64xf32>
    %13 = arith.mulf %12, %12 : vector<8x64xf32>
    %cst_10 = arith.constant 1.000000e+00 : f32
    %14 = vector.broadcast %cst_10 : f32 to vector<8x64xf32>
    %15 = arith.addf %13, %14 : vector<8x64xf32>
    %16 = tpu.reciprocal %15 : vector<8x64xf32> -> vector<8x64xf32>
    %cst_11 = arith.constant 2.000000e+00 : f32
    %17 = vector.broadcast %cst_11 : f32 to vector<8x64xf32>
    %18 = arith.mulf %17, %16 : vector<8x64xf32>
    %cst_12 = arith.constant 1.000000e+00 : f32
    %19 = vector.broadcast %cst_12 : f32 to vector<8x64xf32>
    %20 = arith.subf %19, %18 : vector<8x64xf32>
    %21 = arith.mulf %9, %20 : vector<8x64xf32>
    %c32 = arith.constant 32 : index
    %c0_13 = arith.constant 0 : index
    %22 = vector.load %arg3[%c32, %c0_13] : memref<224x64xf32, #tpu.memory_space<vmem>>, vector<64x64xf32>
    %cst_14 = arith.constant dense<0.000000e+00> : vector<8x64xf32>
    %23 = tpu.matmul %21, %22, %cst_14 {dimension_numbers = #tpu.dot_dimension_numbers<[1], [0], [0], [1], [0, 0, 1, 1], [], []>} : vector<8x64xf32>, vector<64x64xf32>, vector<8x64xf32> -> vector<8x64xf32>
    %c1 = arith.constant 1 : index
    %c0_15 = arith.constant 0 : index
    %24 = vector.load %arg4[%c1, %c0_15] : memref<4x64xf32, #tpu.memory_space<vmem>>, vector<1x64xf32>
    %25 = vector.broadcast %24 : vector<1x64xf32> to vector<8x64xf32>
    %26 = arith.addf %23, %25 : vector<8x64xf32>
    %27 = math.exp %26 : vector<8x64xf32>
    %cst_16 = arith.constant 1.000000e+00 : f32
    %28 = vector.broadcast %cst_16 : f32 to vector<8x64xf32>
    %29 = arith.addf %28, %27 : vector<8x64xf32>
    %30 = arith.mulf %29, %29 : vector<8x64xf32>
    %cst_17 = arith.constant 1.000000e+00 : f32
    %31 = vector.broadcast %cst_17 : f32 to vector<8x64xf32>
    %32 = arith.addf %30, %31 : vector<8x64xf32>
    %33 = tpu.reciprocal %32 : vector<8x64xf32> -> vector<8x64xf32>
    %cst_18 = arith.constant 2.000000e+00 : f32
    %34 = vector.broadcast %cst_18 : f32 to vector<8x64xf32>
    %35 = arith.mulf %34, %33 : vector<8x64xf32>
    %cst_19 = arith.constant 1.000000e+00 : f32
    %36 = vector.broadcast %cst_19 : f32 to vector<8x64xf32>
    %37 = arith.subf %36, %35 : vector<8x64xf32>
    %38 = arith.mulf %26, %37 : vector<8x64xf32>
    %c96 = arith.constant 96 : index
    %c0_20 = arith.constant 0 : index
    %39 = vector.load %arg3[%c96, %c0_20] : memref<224x64xf32, #tpu.memory_space<vmem>>, vector<64x64xf32>
    %cst_21 = arith.constant dense<0.000000e+00> : vector<8x64xf32>
    %40 = tpu.matmul %38, %39, %cst_21 {dimension_numbers = #tpu.dot_dimension_numbers<[1], [0], [0], [1], [0, 0, 1, 1], [], []>} : vector<8x64xf32>, vector<64x64xf32>, vector<8x64xf32> -> vector<8x64xf32>
    %c2 = arith.constant 2 : index
    %c0_22 = arith.constant 0 : index
    %41 = vector.load %arg4[%c2, %c0_22] : memref<4x64xf32, #tpu.memory_space<vmem>>, vector<1x64xf32>
    %42 = vector.broadcast %41 : vector<1x64xf32> to vector<8x64xf32>
    %43 = arith.addf %40, %42 : vector<8x64xf32>
    %44 = math.exp %43 : vector<8x64xf32>
    %cst_23 = arith.constant 1.000000e+00 : f32
    %45 = vector.broadcast %cst_23 : f32 to vector<8x64xf32>
    %46 = arith.addf %45, %44 : vector<8x64xf32>
    %47 = arith.mulf %46, %46 : vector<8x64xf32>
    %cst_24 = arith.constant 1.000000e+00 : f32
    %48 = vector.broadcast %cst_24 : f32 to vector<8x64xf32>
    %49 = arith.addf %47, %48 : vector<8x64xf32>
    %50 = tpu.reciprocal %49 : vector<8x64xf32> -> vector<8x64xf32>
    %cst_25 = arith.constant 2.000000e+00 : f32
    %51 = vector.broadcast %cst_25 : f32 to vector<8x64xf32>
    %52 = arith.mulf %51, %50 : vector<8x64xf32>
    %cst_26 = arith.constant 1.000000e+00 : f32
    %53 = vector.broadcast %cst_26 : f32 to vector<8x64xf32>
    %54 = arith.subf %53, %52 : vector<8x64xf32>
    %55 = arith.mulf %43, %54 : vector<8x64xf32>
    %c160 = arith.constant 160 : index
    %c0_27 = arith.constant 0 : index
    %56 = vector.load %arg3[%c160, %c0_27] : memref<224x64xf32, #tpu.memory_space<vmem>>, vector<64x64xf32>
    %cst_28 = arith.constant dense<0.000000e+00> : vector<8x64xf32>
    %57 = tpu.matmul %55, %56, %cst_28 {dimension_numbers = #tpu.dot_dimension_numbers<[1], [0], [0], [1], [0, 0, 1, 1], [], []>} : vector<8x64xf32>, vector<64x64xf32>, vector<8x64xf32> -> vector<8x64xf32>
    %c3 = arith.constant 3 : index
    %c0_29 = arith.constant 0 : index
    %58 = vector.load %arg4[%c3, %c0_29] : memref<4x64xf32, #tpu.memory_space<vmem>>, vector<1x64xf32>
    %59 = vector.broadcast %58 : vector<1x64xf32> to vector<8x64xf32>
    %60 = arith.addf %57, %59 : vector<8x64xf32>
    %61 = vector.extract_strided_slice %60 {offsets = [0, 0], sizes = [8, 2], strides = [1, 1]} : vector<8x64xf32> to vector<8x2xf32>
    %c0_30 = arith.constant 0 : index
    %c0_31 = arith.constant 0 : index
    %62 = vector.load %arg5[%c0_30, %c0_31] : memref<8x2xf32, #tpu.memory_space<vmem>>, vector<8x2xf32>
    tpu.vector_store %arg5[%c0_30, %c0_31], %61 {strides = array<i32>} : memref<8x2xf32, #tpu.memory_space<vmem>>, vector<8x2xf32>,
    return
  }
  func.func @transform_0(%arg0: i32) -> (i32, i32) {
    %c0_i32 = arith.constant 0 : i32
    %c0_i32_0 = arith.constant 0 : i32
    return %arg0, %c0_i32 : i32, i32
  }
  func.func @transform_1(%arg0: i32) -> (i32, i32) {
    %c0_i32 = arith.constant 0 : i32
    %c0_i32_0 = arith.constant 0 : i32
    return %arg0, %c0_i32 : i32, i32
  }
  func.func @transform_2(%arg0: i32) -> (i32, i32) {
    %c0_i32 = arith.constant 0 : i32
    %c0_i32_0 = arith.constant 0 : i32
    %c0_i32_1 = arith.constant 0 : i32
    return %c0_i32, %c0_i32_0 : i32, i32
  }
  func.func @transform_3(%arg0: i32) -> (i32, i32) {
    %c0_i32 = arith.constant 0 : i32
    %c0_i32_0 = arith.constant 0 : i32
    %c0_i32_1 = arith.constant 0 : i32
    return %c0_i32, %c0_i32_0 : i32, i32
  }
  func.func @transform_4(%arg0: i32) -> (i32, i32) {
    %c0_i32 = arith.constant 0 : i32
    %c0_i32_0 = arith.constant 0 : i32
    return %arg0, %c0_i32 : i32, i32
  }
}

</mosaic_0001>

<llo_original>
// kernel: tpu_custom_call.1
$region0: #{tpu_custom_call.1}
  #allocation0 [shape = 'u32[]', space=smem, size = 0x4, offset = 0x4, fixed_abs, tag = 'smem constant byte address 0x4 - core index']
  #allocation1 [shape = 'u32[144,128]{1,0:T(1,128)}', space=vmem, size = 0x12000, scoped, tag = 'internal scratch']
  %s0 = inlined_call_operand.vmem [shape: f32[8,24], index: 0, kind: input, shape index: {}]
  %s1 = inlined_call_operand.vmem [shape: f32[8,8], index: 1, kind: input, shape index: {}]
  %s2 = inlined_call_operand.vmem [shape: f32[224,64], index: 2, kind: input, shape index: {}]
  %s3 = inlined_call_operand.vmem [shape: f32[4,64], index: 3, kind: input, shape index: {}]
  %s4 = inlined_call_operand.vmem [shape: f32[8,2], index: 4, kind: output, shape index: {}]
  %s5 = sld [smem:[#allocation0]]
  $region26: #{tpu_custom_call.1} parent=0
    _
  %s7 = ssub.s32 1, %s5
  %s8 = scalar_select 0, %s7, %s5
  // Predicated region
  $region2: #{tpu_custom_call.1} parent=0 // pred_check
    _
  $region3: #{tpu_custom_call.1} parent=0 // pred_check_branch
    %10 = sbr.rel (0) target = $region5
  $region4: #{tpu_custom_call.1} parent=0 // pred_region
    _
  $region5: #{tpu_custom_call.1} parent=0 // pred_fallthru
    _
  // Predicated region
  $region6: #{tpu_custom_call.1} parent=0 // pred_check
    _
  $region7: #{tpu_custom_call.1} parent=0 // pred_check_branch
    %12 = sbr.rel (0) target = $region9
  $region8: #{tpu_custom_call.1} parent=0 // pred_region
    _
  $region9: #{tpu_custom_call.1} parent=0 // pred_fallthru
    _
  // Predicated region
  $region10: #{tpu_custom_call.1} parent=0 // pred_check
    _
  $region11: #{tpu_custom_call.1} parent=0 // pred_check_branch
    %14 = sbr.rel (0) target = $region13
  $region12: #{tpu_custom_call.1} parent=0 // pred_region
    _
  $region13: #{tpu_custom_call.1} parent=0 // pred_fallthru
    _
  // Predicated region
  $region14: #{tpu_custom_call.1} parent=0 // pred_check
    _
  $region15: #{tpu_custom_call.1} parent=0 // pred_check_branch
    %16 = sbr.rel (0) target = $region17
  $region16: #{tpu_custom_call.1} parent=0 // pred_region
    _
  $region17: #{tpu_custom_call.1} parent=0 // pred_fallthru
    _
  %v17 = vld [vmem:[%s0] sm:$0xff]
  %v18 = vld [vmem:[%s1] sm:$0xff]
  %v19 = vld [vmem:[%s2] sm:$0xff]
  %v20 = vld [vmem:[%s2 + $0x8] sm:$0xff]
  %v21 = vld [vmem:[%s2 + $0x10] sm:$0xff]
  %v22 = vld [vmem:[%s2 + $0x18] sm:$0xff]
  %vm23 = vcmask 64512
  %v25 = vsel %vm23, %v18, 0
  %27 = vmatprep.subr.mxu0 0.0
  %28 = vmatpush1.msra.mxu0 %v22
  %29 = vmatprep.subr.mxu0 0.0
  %30 = vmatpush1.msra.mxu0 0.0
  %31 = vmatprep.subr.mxu0 0.0
  %32 = vmatpush1.msra.mxu0 0.0
  %33 = vmatprep.subr.mxu0 0.0
  %34 = vmatpush1.msra.mxu0 0.0
  %35 = vmatprep.subr.mxu0 0.0
  %36 = vmatpush1.msra.mxu0 0.0
  %37 = vmatprep.subr.mxu0 0.0
  %38 = vmatpush1.msra.mxu0 0.0
  %39 = vmatprep.subr.mxu0 0.0
  %40 = vmatpush1.msra.mxu0 0.0
  %41 = vmatprep.subr.mxu0 0.0
  %42 = vmatpush1.msra.mxu0 0.0
  %43 = vmatprep.subr.mxu0 0.0
  %44 = vmatpush1.msra.mxu0 0.0
  %45 = vmatprep.subr.mxu0 0.0
  %46 = vmatpush1.msra.mxu0 0.0
  %47 = vmatprep.subr.mxu0 0.0
  %48 = vmatpush1.msra.mxu0 0.0
  %49 = vmatprep.subr.mxu0 0.0
  %50 = vmatpush1.msra.mxu0 0.0
  %51 = vmatprep.subr.mxu0 0.0
  %52 = vmatpush1.msra.mxu0 0.0
  %53 = vmatprep.subr.mxu0 0.0
  %54 = vmatpush1.msra.mxu0 0.0
  %55 = vmatprep.subr.mxu0 0.0
  %56 = vmatpush1.msra.mxu0 0.0
  %57 = vmatprep.subr.mxu0 0.0
  %58 = vmatpush1.msra.mxu0 0.0
  %59 = vmatprep.subr.mxu0 0.0
  %60 = vmatpush1.msra.mxu0 0.0
  %61 = vmatprep.subr.mxu0 0.0
  %62 = vmatpush1.msra.mxu0 0.0
  %63 = vmatprep.subr.mxu0 0.0
  %64 = vmatpush1.msra.mxu0 0.0
  %65 = vmatprep.subr.mxu0 0.0
  %66 = vmatpush1.msra.mxu0 0.0
  %67 = vmatprep.subr.mxu0 0.0
  %68 = vmatpush1.msra.mxu0 0.0
  %69 = vmatprep.subr.mxu0 0.0
  %70 = vmatpush1.msra.mxu0 0.0
  %71 = vmatprep.subr.mxu0 0.0
  %72 = vmatpush1.msra.mxu0 0.0
  %73 = vmatprep.subr.mxu0 0.0
  %74 = vmatpush1.msra.mxu0 0.0
  %75 = vmatprep.subr.mxu0 0.0
  %76 = vmatpush1.msra.mxu0 0.0
  %77 = vmatprep.subr.mxu0 0.0
  %78 = vmatpush1.msra.mxu0 0.0
  %79 = vmatprep.subr.mxu0 0.0
  %80 = vmatpush1.msra.mxu0 0.0
  %81 = vmatprep.subr.mxu0 0.0
  %82 = vmatpush1.msra.mxu0 0.0
  %83 = vmatprep.subr.mxu0 0.0
  %84 = vmatpush1.msra.mxu0 0.0
  %85 = vmatprep.subr.mxu0 0.0
  %86 = vmatpush1.msra.mxu0 0.0
  %87 = vmatprep.subr.mxu0 0.0
  %88 = vmatpush1.msra.mxu0 0.0
  %89 = vmatprep.subr.mxu0 0.0
  %90 = vmatpush1.msra.mxu0 0.0
  %91 = vmatprep.mubr.f32.mxu0 0.0
  %92 = vmatmul.mubr.f32.gmra.mrb[0].mxu0 %v25
  %v93 = vpop.f32.mrb[0].mxu0
  %v94 = vadd.f32 0.0, %v93
  %v95 = vpop.f32.mrb[0].mxu0
  %96 = vdwg.mxu0
  %vm97 = vcmask 195584
  %v99 = vsel %vm97, %v17, 0
  %101 = vmatprep.subr.mxu0 0.0
  %102 = vmatpush1.msra.mxu0 %v19
  %103 = vmatprep.subr.mxu0 0.0
  %104 = vmatpush1.msra.mxu0 %v20
  %105 = vmatprep.subr.mxu0 0.0
  %106 = vmatpush1.msra.mxu0 %v21
  %107 = vmatprep.subr.mxu0 0.0
  %108 = vmatpush1.msra.mxu0 0.0
  %109 = vmatprep.subr.mxu0 0.0
  %110 = vmatpush1.msra.mxu0 0.0
  %111 = vmatprep.subr.mxu0 0.0
  %112 = vmatpush1.msra.mxu0 0.0
  %113 = vmatprep.subr.mxu0 0.0
  %114 = vmatpush1.msra.mxu0 0.0
  %115 = vmatprep.subr.mxu0 0.0
  %116 = vmatpush1.msra.mxu0 0.0
  %117 = vmatprep.subr.mxu0 0.0
  %118 = vmatpush1.msra.mxu0 0.0
  %119 = vmatprep.subr.mxu0 0.0
  %120 = vmatpush1.msra.mxu0 0.0
  %121 = vmatprep.subr.mxu0 0.0
  %122 = vmatpush1.msra.mxu0 0.0
  %123 = vmatprep.subr.mxu0 0.0
  %124 = vmatpush1.msra.mxu0 0.0
  %125 = vmatprep.subr.mxu0 0.0
  %126 = vmatpush1.msra.mxu0 0.0
  %127 = vmatprep.subr.mxu0 0.0
  %128 = vmatpush1.msra.mxu0 0.0
  %129 = vmatprep.subr.mxu0 0.0
  %130 = vmatpush1.msra.mxu0 0.0
  %131 = vmatprep.subr.mxu0 0.0
  %132 = vmatpush1.msra.mxu0 0.0
  %133 = vmatprep.subr.mxu0 0.0
  %134 = vmatpush1.msra.mxu0 0.0
  %135 = vmatprep.subr.mxu0 0.0
  %136 = vmatpush1.msra.mxu0 0.0
  %137 = vmatprep.subr.mxu0 0.0
  %138 = vmatpush1.msra.mxu0 0.0
  %139 = vmatprep.subr.mxu0 0.0
  %140 = vmatpush1.msra.mxu0 0.0
  %141 = vmatprep.subr.mxu0 0.0
  %142 = vmatpush1.msra.mxu0 0.0
  %143 = vmatprep.subr.mxu0 0.0
  %144 = vmatpush1.msra.mxu0 0.0
  %145 = vmatprep.subr.mxu0 0.0
  %146 = vmatpush1.msra.mxu0 0.0
  %147 = vmatprep.subr.mxu0 0.0
  %148 = vmatpush1.msra.mxu0 0.0
  %149 = vmatprep.subr.mxu0 0.0
  %150 = vmatpush1.msra.mxu0 0.0
  %151 = vmatprep.subr.mxu0 0.0
  %152 = vmatpush1.msra.mxu0 0.0
  %153 = vmatprep.subr.mxu0 0.0
  %154 = vmatpush1.msra.mxu0 0.0
  %155 = vmatprep.subr.mxu0 0.0
  %156 = vmatpush1.msra.mxu0 0.0
  %157 = vmatprep.subr.mxu0 0.0
  %158 = vmatpush1.msra.mxu0 0.0
  %159 = vmatprep.subr.mxu0 0.0
  %160 = vmatpush1.msra.mxu0 0.0
  %161 = vmatprep.subr.mxu0 0.0
  %162 = vmatpush1.msra.mxu0 0.0
  %163 = vmatprep.subr.mxu0 0.0
  %164 = vmatpush1.msra.mxu0 0.0
  %165 = vmatprep.mubr.f32.mxu0 0.0
  %166 = vmatmul.mubr.f32.gmra.mrb[0].mxu0 %v99
  %v167 = vpop.f32.mrb[0].mxu0
  %v168 = vadd.f32 %v94, %v167
  %v169 = vpop.f32.mrb[0].mxu0
  %170 = vdwg.mxu0
  %v171 = vld [vmem:[%s3] sm:$0x1]
  %v172 = vlaneseq
  %v173 = vshrl.u32 %v172, 7
  %v174 = vsub.s32 0, %v173
  %v175 = vrot.slane %v171, %v174
  %v176 = vadd.f32 %v168, %v175
  %v177 = vmul.f32 %v176, 1.442695
  %v178 = vpow.pop %v177
  %v179 = vadd.f32 %v178, 1.0
  %v180 = vmul.f32 %v179, %v179
  %v181 = vadd.f32 %v180, 1.0
  %v182 = vrcp.pop %v181
  %v183 = vmul.f32 %v182, 2.0
  %v184 = vsub.f32 1.0, %v183
  %v185 = vmul.f32 %v176, %v184
  %v186 = vld [vmem:[%s2 + $0x20] sm:$0xff]
  %v187 = vld [vmem:[%s2 + $0x28] sm:$0xff]
  %v188 = vld [vmem:[%s2 + $0x30] sm:$0xff]
  %v189 = vld [vmem:[%s2 + $0x38] sm:$0xff]
  %v190 = vld [vmem:[%s2 + $0x40] sm:$0xff]
  %v191 = vld [vmem:[%s2 + $0x48] sm:$0xff]
  %v192 = vld [vmem:[%s2 + $0x50] sm:$0xff]
  %v193 = vld [vmem:[%s2 + $0x58] sm:$0xff]
  %v194 = vld [vmem:[%s3 + $0x1] sm:$0x1]
  %v195 = vlaneseq
  %v196 = vshrl.u32 %v195, 7
  %v197 = vsub.s32 0, %v196
  %v198 = vrot.slane %v194, %v197
  %vm199 = vcmask 523264
  %v201 = vsel %vm199, %v185, 0
  %203 = vmatprep.subr.mxu0 0.0
  %204 = vmatpush1.msra.mxu0 %v186
  %205 = vmatprep.subr.mxu0 0.0
  %206 = vmatpush1.msra.mxu0 %v187
  %207 = vmatprep.subr.mxu0 0.0
  %208 = vmatpush1.msra.mxu0 %v188
  %209 = vmatprep.subr.mxu0 0.0
  %210 = vmatpush1.msra.mxu0 %v189
  %211 = vmatprep.subr.mxu0 0.0
  %212 = vmatpush1.msra.mxu0 %v190
  %213 = vmatprep.subr.mxu0 0.0
  %214 = vmatpush1.msra.mxu0 %v191
  %215 = vmatprep.subr.mxu0 0.0
  %216 = vmatpush1.msra.mxu0 %v192
  %217 = vmatprep.subr.mxu0 0.0
  %218 = vmatpush1.msra.mxu0 %v193
  %219 = vmatprep.subr.mxu0 0.0
  %220 = vmatpush1.msra.mxu0 0.0
  %221 = vmatprep.subr.mxu0 0.0
  %222 = vmatpush1.msra.mxu0 0.0
  %223 = vmatprep.subr.mxu0 0.0
  %224 = vmatpush1.msra.mxu0 0.0
  %225 = vmatprep.subr.mxu0 0.0
  %226 = vmatpush1.msra.mxu0 0.0
  %227 = vmatprep.subr.mxu0 0.0
  %228 = vmatpush1.msra.mxu0 0.0
  %229 = vmatprep.subr.mxu0 0.0
  %230 = vmatpush1.msra.mxu0 0.0
  %231 = vmatprep.subr.mxu0 0.0
  %232 = vmatpush1.msra.mxu0 0.0
  %233 = vmatprep.subr.mxu0 0.0
  %234 = vmatpush1.msra.mxu0 0.0
  %235 = vmatprep.subr.mxu0 0.0
  %236 = vmatpush1.msra.mxu0 0.0
  %237 = vmatprep.subr.mxu0 0.0
  %238 = vmatpush1.msra.mxu0 0.0
  %239 = vmatprep.subr.mxu0 0.0
  %240 = vmatpush1.msra.mxu0 0.0
  %241 = vmatprep.subr.mxu0 0.0
  %242 = vmatpush1.msra.mxu0 0.0
  %243 = vmatprep.subr.mxu0 0.0
  %244 = vmatpush1.msra.mxu0 0.0
  %245 = vmatprep.subr.mxu0 0.0
  %246 = vmatpush1.msra.mxu0 0.0
  %247 = vmatprep.subr.mxu0 0.0
  %248 = vmatpush1.msra.mxu0 0.0
  %249 = vmatprep.subr.mxu0 0.0
  %250 = vmatpush1.msra.mxu0 0.0
  %251 = vmatprep.subr.mxu0 0.0
  %252 = vmatpush1.msra.mxu0 0.0
  %253 = vmatprep.subr.mxu0 0.0
  %254 = vmatpush1.msra.mxu0 0.0
  %255 = vmatprep.subr.mxu0 0.0
  %256 = vmatpush1.msra.mxu0 0.0
  %257 = vmatprep.subr.mxu0 0.0
  %258 = vmatpush1.msra.mxu0 0.0
  %259 = vmatprep.subr.mxu0 0.0
  %260 = vmatpush1.msra.mxu0 0.0
  %261 = vmatprep.subr.mxu0 0.0
  %262 = vmatpush1.msra.mxu0 0.0
  %263 = vmatprep.subr.mxu0 0.0
  %264 = vmatpush1.msra.mxu0 0.0
  %265 = vmatprep.subr.mxu0 0.0
  %266 = vmatpush1.msra.mxu0 0.0
  %267 = vmatprep.mubr.f32.mxu0 0.0
  %268 = vmatmul.mubr.f32.gmra.mrb[0].mxu0 %v201
  %v269 = vpop.f32.mrb[0].mxu0
  %v270 = vadd.f32 %v198, %v269
  %v271 = vpop.f32.mrb[0].mxu0
  %272 = vdwg.mxu0
  %v273 = vmul.f32 %v270, 1.442695
  %v274 = vpow.pop %v273
  %v275 = vadd.f32 %v274, 1.0
  %v276 = vmul.f32 %v275, %v275
  %v277 = vadd.f32 %v276, 1.0
  %v278 = vrcp.pop %v277
  %v279 = vmul.f32 %v278, 2.0
  %v280 = vsub.f32 1.0, %v279
  %v281 = vmul.f32 %v270, %v280
  %v282 = vld [vmem:[%s2 + $0x60] sm:$0xff]
  %v283 = vld [vmem:[%s2 + $0x68] sm:$0xff]
  %v284 = vld [vmem:[%s2 + $0x70] sm:$0xff]
  %v285 = vld [vmem:[%s2 + $0x78] sm:$0xff]
  %v286 = vld [vmem:[%s2 + $0x80] sm:$0xff]
  %v287 = vld [vmem:[%s2 + $0x88] sm:$0xff]
  %v288 = vld [vmem:[%s2 + $0x90] sm:$0xff]
  %v289 = vld [vmem:[%s2 + $0x98] sm:$0xff]
  %v290 = vld [vmem:[%s3 + $0x2] sm:$0x1]
  %v291 = vlaneseq
  %v292 = vshrl.u32 %v291, 7
  %v293 = vsub.s32 0, %v292
  %v294 = vrot.slane %v290, %v293
  %v296 = vsel %vm199, %v281, 0
  %298 = vmatprep.subr.mxu0 0.0
  %299 = vmatpush1.msra.mxu0 %v282
  %300 = vmatprep.subr.mxu0 0.0
  %301 = vmatpush1.msra.mxu0 %v283
  %302 = vmatprep.subr.mxu0 0.0
  %303 = vmatpush1.msra.mxu0 %v284
  %304 = vmatprep.subr.mxu0 0.0
  %305 = vmatpush1.msra.mxu0 %v285
  %306 = vmatprep.subr.mxu0 0.0
  %307 = vmatpush1.msra.mxu0 %v286
  %308 = vmatprep.subr.mxu0 0.0
  %309 = vmatpush1.msra.mxu0 %v287
  %310 = vmatprep.subr.mxu0 0.0
  %311 = vmatpush1.msra.mxu0 %v288
  %312 = vmatprep.subr.mxu0 0.0
  %313 = vmatpush1.msra.mxu0 %v289
  %314 = vmatprep.subr.mxu0 0.0
  %315 = vmatpush1.msra.mxu0 0.0
  %316 = vmatprep.subr.mxu0 0.0
  %317 = vmatpush1.msra.mxu0 0.0
  %318 = vmatprep.subr.mxu0 0.0
  %319 = vmatpush1.msra.mxu0 0.0
  %320 = vmatprep.subr.mxu0 0.0
  %321 = vmatpush1.msra.mxu0 0.0
  %322 = vmatprep.subr.mxu0 0.0
  %323 = vmatpush1.msra.mxu0 0.0
  %324 = vmatprep.subr.mxu0 0.0
  %325 = vmatpush1.msra.mxu0 0.0
  %326 = vmatprep.subr.mxu0 0.0
  %327 = vmatpush1.msra.mxu0 0.0
  %328 = vmatprep.subr.mxu0 0.0
  %329 = vmatpush1.msra.mxu0 0.0
  %330 = vmatprep.subr.mxu0 0.0
  %331 = vmatpush1.msra.mxu0 0.0
  %332 = vmatprep.subr.mxu0 0.0
  %333 = vmatpush1.msra.mxu0 0.0
  %334 = vmatprep.subr.mxu0 0.0
  %335 = vmatpush1.msra.mxu0 0.0
  %336 = vmatprep.subr.mxu0 0.0
  %337 = vmatpush1.msra.mxu0 0.0
  %338 = vmatprep.subr.mxu0 0.0
  %339 = vmatpush1.msra.mxu0 0.0
  %340 = vmatprep.subr.mxu0 0.0
  %341 = vmatpush1.msra.mxu0 0.0
  %342 = vmatprep.subr.mxu0 0.0
  %343 = vmatpush1.msra.mxu0 0.0
  %344 = vmatprep.subr.mxu0 0.0
  %345 = vmatpush1.msra.mxu0 0.0
  %346 = vmatprep.subr.mxu0 0.0
  %347 = vmatpush1.msra.mxu0 0.0
  %348 = vmatprep.subr.mxu0 0.0
  %349 = vmatpush1.msra.mxu0 0.0
  %350 = vmatprep.subr.mxu0 0.0
  %351 = vmatpush1.msra.mxu0 0.0
  %352 = vmatprep.subr.mxu0 0.0
  %353 = vmatpush1.msra.mxu0 0.0
  %354 = vmatprep.subr.mxu0 0.0
  %355 = vmatpush1.msra.mxu0 0.0
  %356 = vmatprep.subr.mxu0 0.0
  %357 = vmatpush1.msra.mxu0 0.0
  %358 = vmatprep.subr.mxu0 0.0
  %359 = vmatpush1.msra.mxu0 0.0
  %360 = vmatprep.subr.mxu0 0.0
  %361 = vmatpush1.msra.mxu0 0.0
  %362 = vmatprep.mubr.f32.mxu0 0.0
  %363 = vmatmul.mubr.f32.gmra.mrb[0].mxu0 %v296
  %v364 = vpop.f32.mrb[0].mxu0
  %v365 = vadd.f32 %v294, %v364
  %v366 = vpop.f32.mrb[0].mxu0
  %367 = vdwg.mxu0
  %v368 = vmul.f32 %v365, 1.442695
  %v369 = vpow.pop %v368
  %v370 = vadd.f32 %v369, 1.0
  %v371 = vmul.f32 %v370, %v370
  %v372 = vadd.f32 %v371, 1.0
  %v373 = vrcp.pop %v372
  %v374 = vmul.f32 %v373, 2.0
  %v375 = vsub.f32 1.0, %v374
  %v376 = vmul.f32 %v365, %v375
  %v377 = vld [vmem:[%s2 + $0xa0] sm:$0xff]
  %v378 = vld [vmem:[%s2 + $0xa8] sm:$0xff]
  %v379 = vld [vmem:[%s2 + $0xb0] sm:$0xff]
  %v380 = vld [vmem:[%s2 + $0xb8] sm:$0xff]
  %v381 = vld [vmem:[%s2 + $0xc0] sm:$0xff]
  %v382 = vld [vmem:[%s2 + $0xc8] sm:$0xff]
  %v383 = vld [vmem:[%s2 + $0xd0] sm:$0xff]
  %v384 = vld [vmem:[%s2 + $0xd8] sm:$0xff]
  %v385 = vld [vmem:[%s3 + $0x3] sm:$0x1]
  %v386 = vlaneseq
  %v387 = vshrl.u32 %v386, 7
  %v388 = vsub.s32 0, %v387
  %v389 = vrot.slane %v385, %v388
  %v391 = vsel %vm199, %v376, 0
  %393 = vmatprep.subr.mxu0 0.0
  %394 = vmatpush1.msra.mxu0 %v377
  %395 = vmatprep.subr.mxu0 0.0
  %396 = vmatpush1.msra.mxu0 %v378
  %397 = vmatprep.subr.mxu0 0.0
  %398 = vmatpush1.msra.mxu0 %v379
  %399 = vmatprep.subr.mxu0 0.0
  %400 = vmatpush1.msra.mxu0 %v380
  %401 = vmatprep.subr.mxu0 0.0
  %402 = vmatpush1.msra.mxu0 %v381
  %403 = vmatprep.subr.mxu0 0.0
  %404 = vmatpush1.msra.mxu0 %v382
  %405 = vmatprep.subr.mxu0 0.0
  %406 = vmatpush1.msra.mxu0 %v383
  %407 = vmatprep.subr.mxu0 0.0
  %408 = vmatpush1.msra.mxu0 %v384
  %409 = vmatprep.subr.mxu0 0.0
  %410 = vmatpush1.msra.mxu0 0.0
  %411 = vmatprep.subr.mxu0 0.0
  %412 = vmatpush1.msra.mxu0 0.0
  %413 = vmatprep.subr.mxu0 0.0
  %414 = vmatpush1.msra.mxu0 0.0
  %415 = vmatprep.subr.mxu0 0.0
  %416 = vmatpush1.msra.mxu0 0.0
  %417 = vmatprep.subr.mxu0 0.0
  %418 = vmatpush1.msra.mxu0 0.0
  %419 = vmatprep.subr.mxu0 0.0
  %420 = vmatpush1.msra.mxu0 0.0
  %421 = vmatprep.subr.mxu0 0.0
  %422 = vmatpush1.msra.mxu0 0.0
  %423 = vmatprep.subr.mxu0 0.0
  %424 = vmatpush1.msra.mxu0 0.0
  %425 = vmatprep.subr.mxu0 0.0
  %426 = vmatpush1.msra.mxu0 0.0
  %427 = vmatprep.subr.mxu0 0.0
  %428 = vmatpush1.msra.mxu0 0.0
  %429 = vmatprep.subr.mxu0 0.0
  %430 = vmatpush1.msra.mxu0 0.0
  %431 = vmatprep.subr.mxu0 0.0
  %432 = vmatpush1.msra.mxu0 0.0
  %433 = vmatprep.subr.mxu0 0.0
  %434 = vmatpush1.msra.mxu0 0.0
  %435 = vmatprep.subr.mxu0 0.0
  %436 = vmatpush1.msra.mxu0 0.0
  %437 = vmatprep.subr.mxu0 0.0
  %438 = vmatpush1.msra.mxu0 0.0
  %439 = vmatprep.subr.mxu0 0.0
  %440 = vmatpush1.msra.mxu0 0.0
  %441 = vmatprep.subr.mxu0 0.0
  %442 = vmatpush1.msra.mxu0 0.0
  %443 = vmatprep.subr.mxu0 0.0
  %444 = vmatpush1.msra.mxu0 0.0
  %445 = vmatprep.subr.mxu0 0.0
  %446 = vmatpush1.msra.mxu0 0.0
  %447 = vmatprep.subr.mxu0 0.0
  %448 = vmatpush1.msra.mxu0 0.0
  %449 = vmatprep.subr.mxu0 0.0
  %450 = vmatpush1.msra.mxu0 0.0
  %451 = vmatprep.subr.mxu0 0.0
  %452 = vmatpush1.msra.mxu0 0.0
  %453 = vmatprep.subr.mxu0 0.0
  %454 = vmatpush1.msra.mxu0 0.0
  %455 = vmatprep.subr.mxu0 0.0
  %456 = vmatpush1.msra.mxu0 0.0
  %457 = vmatprep.mubr.f32.mxu0 0.0
  %458 = vmatmul.mubr.f32.gmra.mrb[0].mxu0 %v391
  %v459 = vpop.f32.mrb[0].mxu0
  %v460 = vadd.f32 %v389, %v459
  %v461 = vpop.f32.mrb[0].mxu0
  %462 = vdwg.mxu0
  %vm463 = vcmask 15360
  %464 = vst.msk [vmem:[%s4] sm:$0xff] %vm463, %v460
  // Predicated region
  $region18: #{tpu_custom_call.1} parent=0 // pred_check
    _
  $region19: #{tpu_custom_call.1} parent=0 // pred_check_branch
    %466 = sbr.rel (0) target = $region21
  $region20: #{tpu_custom_call.1} parent=0 // pred_region
    _
  $region21: #{tpu_custom_call.1} parent=0 // pred_fallthru
    _
  // Predicated region
  $region22: #{tpu_custom_call.1} parent=0 // pred_check
    _
  $region23: #{tpu_custom_call.1} parent=0 // pred_check_branch
    %468 = sbr.rel (0) target = $region25
  $region24: #{tpu_custom_call.1} parent=0 // pred_region
    _
  $region25: #{tpu_custom_call.1} parent=0 // pred_fallthru
    _

</llo_original>
